<compile_context>
chip_gen: v5e
topology: v5e:2x2
jax: 0.10.0
libtpu: 0.0.40
codegen_flags: <defaults>
</compile_context>

<pallas_src>
import jax
import jax.numpy as jnp
from jax.experimental import pallas as pl
from jax.experimental.pallas import tpu as pltpu

N_S = 4          # CartPole-v1 observation dim
N_A = 2          # CartPole-v1 action dim
HIDDEN = 128
OUT_SUB = 8      # output rows padded to the f32 sublane granule (real Q in [:N_A])


def qnet_kernel(x_ref, w1_ref, b1_ref, w2_ref, b2_ref, w3_ref, b3_ref, o_ref):
    # Activations are (feature, batch): batch on lanes throughout.
    xt = x_ref[...]                              # (N_S, TB) f32
    w1 = w1_ref[...]                             # (HIDDEN, N_S) f32
    tb = xt.shape[1]

    # ----- Layer 1: K=4 -> 4 rank-1 VPU FMAs; accumulator starts as the bias.
    h1 = jnp.broadcast_to(b1_ref[...], (HIDDEN, tb))           # (HIDDEN, TB)
    for k in range(N_S):                                        # unrolled FMAs
        h1 = h1 + w1[:, k:k + 1] * xt[k:k + 1, :]
    h1 = jnp.maximum(h1, 0.0)

    # ----- Layer 2: bf16 MXU matmul (HIDDEN,HIDDEN)x(HIDDEN,TB), f32 accumulation.
    h2 = jnp.dot(w2_ref[...], h1.astype(jnp.bfloat16),
                 preferred_element_type=jnp.float32)
    h2 = jnp.maximum(h2 + b2_ref[...], 0.0)

    # ----- Layer 3: tiny (OUT_SUB,HIDDEN)x(HIDDEN,TB) f32 matmul, lane-dense store.
    q = jnp.dot(w3_ref[...], h2, preferred_element_type=jnp.float32)
    o_ref[...] = (q + b3_ref[...]).astype(o_ref.dtype)


def _round_up(n, m):
    return ((n + m - 1) // m) * m


def _tiling(batch):
    """Static tiling decision: (Bp, tile_b, n_tiles)."""
    bp0 = _round_up(max(batch, 1), 128)          # batch lives on lanes -> 128 granule
    if bp0 < 512:
        n_tiles = 1                              # one step; overhead already tiny
    else:
        # >=2 steps so v7x can shard across both TCs; cap tiles at 4096 lanes so
        # VMEM stays well under v5e's 16 MiB default scoped limit.
        n_tiles = max(2, -(-bp0 // 4096))
    tile_b = _round_up(-(-bp0 // n_tiles), 128)
    return n_tiles * tile_b, tile_b, n_tiles


@jax.jit
def qnet_forward(x, params):
    """x: (B, N_S) float32 -> (B, N_A) float32 Q-values."""
    B = x.shape[0]
    Bp, tile_b, n_tiles = _tiling(B)

    # (B, N_S) -> lane-padded (N_S, Bp); tiny transpose/pad handled by XLA.
    xt = jnp.pad(x.T, ((0, 0), (0, Bp - B)))

    const = lambda arr: pl.BlockSpec(arr.shape, lambda i: (0, 0))   # VMEM-resident

    weight_bytes = (params["w1t"].size * 4 + params["b1t"].size * 4 +
                    params["w2t"].size * 2 + params["b2t"].size * 4 +
                    params["w3t"].size * 4 + params["b3t"].size * 4)
    cost = pl.CostEstimate(
        flops=2 * Bp * HIDDEN * (N_S + HIDDEN + N_A),
        transcendentals=0,
        bytes_accessed=N_S * Bp * 4 + weight_bytes + OUT_SUB * Bp * 4)

    out = pl.pallas_call(
        qnet_kernel,
        out_shape=jax.ShapeDtypeStruct((OUT_SUB, Bp), jnp.float32),
        grid=(n_tiles,),
        in_specs=[
            pl.BlockSpec((N_S, tile_b), lambda i: (0, i)),   # activations: tiled
            const(params["w1t"]), const(params["b1t"]),      # weights: resident
            const(params["w2t"]), const(params["b2t"]),
            const(params["w3t"]), const(params["b3t"]),
        ],
        out_specs=pl.BlockSpec((OUT_SUB, tile_b), lambda i: (0, i)),
        compiler_params=pltpu.CompilerParams(
            dimension_semantics=("parallel",)),
        cost_estimate=cost,
    )(xt, params["w1t"], params["b1t"], params["w2t"], params["b2t"],
      params["w3t"], params["b3t"])

    return out[:N_A, :B].T                       # cheap 2-row slice + tiny transpose


def init_params(key):
    """nn.Linear-style init U(-1/sqrt(fan_in), +1/sqrt(fan_in)).

    Weights stored in PyTorch (out, in) layout (i.e. already transposed for the
    feature-major kernel); biases as (out, 1) columns.  w2 in bf16 (MXU-native,
    half the HBM/VMEM traffic); layer-3 weight/bias padded to OUT_SUB rows.
    """
    ks = jax.random.split(key, 6)

    def linear(kw, kb, fan_in, fan_out):
        bound = 1.0 / jnp.sqrt(float(fan_in))
        w = jax.random.uniform(kw, (fan_out, fan_in), jnp.float32, -bound, bound)
        b = jax.random.uniform(kb, (fan_out, 1), jnp.float32, -bound, bound)
        return w, b

    w1t, b1t = linear(ks[0], ks[1], N_S, HIDDEN)
    w2t, b2t = linear(ks[2], ks[3], HIDDEN, HIDDEN)
    w3t, b3t = linear(ks[4], ks[5], HIDDEN, N_A)

    w3p = jnp.zeros((OUT_SUB, HIDDEN), jnp.float32).at[:N_A, :].set(w3t)
    b3p = jnp.zeros((OUT_SUB, 1), jnp.float32).at[:N_A, :].set(b3t)
    return {
        "w1t": w1t, "b1t": b1t,                       # layer 1 stays f32 (VPU path)
        "w2t": w2t.astype(jnp.bfloat16), "b2t": b2t,  # layer 2 bf16 MXU weights
        "w3t": w3p, "b3t": b3p,                       # layer 3 f32 (tiny, padded)
    }


def qnet_ref(x, p):
    """Pure-JAX reference mirroring the kernel's numerics (bf16 layer-2 inputs)."""
    h1 = jnp.maximum(x @ p["w1t"].T + p["b1t"].T, 0.0)
    h2 = (h1.astype(jnp.bfloat16).astype(jnp.float32)
          @ p["w2t"].astype(jnp.float32).T + p["b2t"].T)
    h2 = jnp.maximum(h2, 0.0)
    q = h2 @ p["w3t"].T + p["b3t"].T
    return q[:, :N_A]


if __name__ == "__main__":
    key = jax.random.PRNGKey(0)
    k_params, k_x = jax.random.split(key)
    params = init_params(k_params)

    B = 200  # DQN replay-sized batch; pads to 256 lanes -> single grid tile
    x = jax.random.normal(k_x, (B, N_S), jnp.float32)

    out = qnet_forward(x, params)
    out = jax.block_until_ready(out)

    ref = qnet_ref(x, params)
    assert out.shape == (B, N_A)
    assert jnp.allclose(out, ref, atol=2e-3, rtol=2e-3), (
        float(jnp.max(jnp.abs(out - ref))))
    print("KERNEL_OK")
</pallas_src>

<mosaic_0001>
module attributes {stable_mosaic.version = 11 : i64} {
  func.func @qnet_kernel(%arg0: i32, %arg1: memref<4x256xf32, #tpu.memory_space<vmem>>, %arg2: memref<128x4xf32, #tpu.memory_space<vmem>>, %arg3: memref<128x1xf32, #tpu.memory_space<vmem>>, %arg4: memref<128x128xbf16, #tpu.memory_space<vmem>>, %arg5: memref<128x1xf32, #tpu.memory_space<vmem>>, %arg6: memref<8x128xf32, #tpu.memory_space<vmem>>, %arg7: memref<8x1xf32, #tpu.memory_space<vmem>>, %arg8: memref<8x256xf32, #tpu.memory_space<vmem>>) attributes {dimension_semantics = [#tpu.dimension_semantics<parallel>], iteration_bounds = array<i64: 1>, scalar_prefetch = 0 : i64, scratch_operands = 0 : i64, tpu.core_type = #tpu.core_type<tc>, window_params = [{transform_indices = @transform_0, window_bounds = array<i64: 4, 256>}, {pipeline_mode = #tpu.pipeline_mode<synchronous>, transform_indices = @transform_1, window_bounds = array<i64: 128, 4>}, {pipeline_mode = #tpu.pipeline_mode<synchronous>, transform_indices = @transform_2, window_bounds = array<i64: 128, 1>}, {pipeline_mode = #tpu.pipeline_mode<synchronous>, transform_indices = @transform_3, window_bounds = array<i64: 128, 128>}, {pipeline_mode = #tpu.pipeline_mode<synchronous>, transform_indices = @transform_4, window_bounds = array<i64: 128, 1>}, {pipeline_mode = #tpu.pipeline_mode<synchronous>, transform_indices = @transform_5, window_bounds = array<i64: 8, 128>}, {pipeline_mode = #tpu.pipeline_mode<synchronous>, transform_indices = @transform_6, window_bounds = array<i64: 8, 1>}, {transform_indices = @transform_7, window_bounds = array<i64: 8, 256>}]} {
    %c0 = arith.constant 0 : index
    %c0_0 = arith.constant 0 : index
    %0 = vector.load %arg1[%c0, %c0_0] : memref<4x256xf32, #tpu.memory_space<vmem>>, vector<4x256xf32>
    %c0_1 = arith.constant 0 : index
    %c0_2 = arith.constant 0 : index
    %1 = vector.load %arg2[%c0_1, %c0_2] : memref<128x4xf32, #tpu.memory_space<vmem>>, vector<128x4xf32>
    %c0_3 = arith.constant 0 : index
    %c0_4 = arith.constant 0 : index
    %2 = vector.load %arg3[%c0_3, %c0_4] : memref<128x1xf32, #tpu.memory_space<vmem>>, vector<128x1xf32>
    %3 = vector.shape_cast %2 : vector<128x1xf32> to vector<128x1xf32>
    %4 = vector.broadcast %3 : vector<128x1xf32> to vector<128x256xf32>
    %5 = vector.extract_strided_slice %1 {offsets = [0, 0], sizes = [128, 1], strides = [1, 1]} : vector<128x4xf32> to vector<128x1xf32>
    %6 = vector.extract_strided_slice %0 {offsets = [0, 0], sizes = [1, 256], strides = [1, 1]} : vector<4x256xf32> to vector<1x256xf32>
    %7 = vector.broadcast %5 : vector<128x1xf32> to vector<128x256xf32>
    %8 = vector.broadcast %6 : vector<1x256xf32> to vector<128x256xf32>
    %9 = arith.mulf %7, %8 : vector<128x256xf32>
    %10 = arith.addf %4, %9 : vector<128x256xf32>
    %11 = vector.extract_strided_slice %1 {offsets = [0, 1], sizes = [128, 1], strides = [1, 1]} : vector<128x4xf32> to vector<128x1xf32>
    %12 = vector.extract_strided_slice %0 {offsets = [1, 0], sizes = [1, 256], strides = [1, 1]} : vector<4x256xf32> to vector<1x256xf32>
    %13 = vector.broadcast %11 : vector<128x1xf32> to vector<128x256xf32>
    %14 = vector.broadcast %12 : vector<1x256xf32> to vector<128x256xf32>
    %15 = arith.mulf %13, %14 : vector<128x256xf32>
    %16 = arith.addf %10, %15 : vector<128x256xf32>
    %17 = vector.extract_strided_slice %1 {offsets = [0, 2], sizes = [128, 1], strides = [1, 1]} : vector<128x4xf32> to vector<128x1xf32>
    %18 = vector.extract_strided_slice %0 {offsets = [2, 0], sizes = [1, 256], strides = [1, 1]} : vector<4x256xf32> to vector<1x256xf32>
    %19 = vector.broadcast %17 : vector<128x1xf32> to vector<128x256xf32>
    %20 = vector.broadcast %18 : vector<1x256xf32> to vector<128x256xf32>
    %21 = arith.mulf %19, %20 : vector<128x256xf32>
    %22 = arith.addf %16, %21 : vector<128x256xf32>
    %23 = vector.extract_strided_slice %1 {offsets = [0, 3], sizes = [128, 1], strides = [1, 1]} : vector<128x4xf32> to vector<128x1xf32>
    %24 = vector.extract_strided_slice %0 {offsets = [3, 0], sizes = [1, 256], strides = [1, 1]} : vector<4x256xf32> to vector<1x256xf32>
    %25 = vector.broadcast %23 : vector<128x1xf32> to vector<128x256xf32>
    %26 = vector.broadcast %24 : vector<1x256xf32> to vector<128x256xf32>
    %27 = arith.mulf %25, %26 : vector<128x256xf32>
    %28 = arith.addf %22, %27 : vector<128x256xf32>
    %cst = arith.constant 0.000000e+00 : f32
    %29 = vector.broadcast %cst : f32 to vector<128x256xf32>
    %30 = arith.maximumf %28, %29 : vector<128x256xf32>
    %c0_5 = arith.constant 0 : index
    %c0_6 = arith.constant 0 : index
    %31 = vector.load %arg4[%c0_5, %c0_6] : memref<128x128xbf16, #tpu.memory_space<vmem>>, vector<128x128xbf16>
    %32 = arith.truncf %30 : vector<128x256xf32> to vector<128x256xbf16>
    %cst_7 = arith.constant dense<0.000000e+00> : vector<128x256xf32>
    %33 = tpu.matmul %31, %32, %cst_7 {dimension_numbers = #tpu.dot_dimension_numbers<[1], [0], [0], [1], [0, 0, 1, 1], [], []>} : vector<128x128xbf16>, vector<128x256xbf16>, vector<128x256xf32> -> vector<128x256xf32>
    %c0_8 = arith.constant 0 : index
    %c0_9 = arith.constant 0 : index
    %34 = vector.load %arg5[%c0_8, %c0_9] : memref<128x1xf32, #tpu.memory_space<vmem>>, vector<128x1xf32>
    %35 = vector.broadcast %34 : vector<128x1xf32> to vector<128x256xf32>
    %36 = arith.addf %33, %35 : vector<128x256xf32>
    %cst_10 = arith.constant 0.000000e+00 : f32
    %37 = vector.broadcast %cst_10 : f32 to vector<128x256xf32>
    %38 = arith.maximumf %36, %37 : vector<128x256xf32>
    %c0_11 = arith.constant 0 : index
    %c0_12 = arith.constant 0 : index
    %39 = vector.load %arg6[%c0_11, %c0_12] : memref<8x128xf32, #tpu.memory_space<vmem>>, vector<8x128xf32>
    %cst_13 = arith.constant dense<0.000000e+00> : vector<8x256xf32>
    %40 = tpu.matmul %39, %38, %cst_13 {dimension_numbers = #tpu.dot_dimension_numbers<[1], [0], [0], [1], [0, 0, 1, 1], [], []>} : vector<8x128xf32>, vector<128x256xf32>, vector<8x256xf32> -> vector<8x256xf32>
    %c0_14 = arith.constant 0 : index
    %c0_15 = arith.constant 0 : index
    %41 = vector.load %arg7[%c0_14, %c0_15] : memref<8x1xf32, #tpu.memory_space<vmem>>, vector<8x1xf32>
    %42 = vector.broadcast %41 : vector<8x1xf32> to vector<8x256xf32>
    %43 = arith.addf %40, %42 : vector<8x256xf32>
    %c0_16 = arith.constant 0 : index
    %c0_17 = arith.constant 0 : index
    %44 = vector.load %arg8[%c0_16, %c0_17] : memref<8x256xf32, #tpu.memory_space<vmem>>, vector<8x256xf32>
    tpu.vector_store %arg8[%c0_16, %c0_17], %43 {strides = array<i32>} : memref<8x256xf32, #tpu.memory_space<vmem>>, vector<8x256xf32>,
    return
  }
  func.func @transform_0(%arg0: i32) -> (i32, i32) {
    %c0_i32 = arith.constant 0 : i32
    %c0_i32_0 = arith.constant 0 : i32
    return %c0_i32, %arg0 : i32, i32
  }
  func.func @transform_1(%arg0: i32) -> (i32, i32) {
    %c0_i32 = arith.constant 0 : i32
    %c0_i32_0 = arith.constant 0 : i32
    %c0_i32_1 = arith.constant 0 : i32
    return %c0_i32, %c0_i32_0 : i32, i32
  }
  func.func @transform_2(%arg0: i32) -> (i32, i32) {
    %c0_i32 = arith.constant 0 : i32
    %c0_i32_0 = arith.constant 0 : i32
    %c0_i32_1 = arith.constant 0 : i32
    return %c0_i32, %c0_i32_0 : i32, i32
  }
  func.func @transform_3(%arg0: i32) -> (i32, i32) {
    %c0_i32 = arith.constant 0 : i32
    %c0_i32_0 = arith.constant 0 : i32
    %c0_i32_1 = arith.constant 0 : i32
    return %c0_i32, %c0_i32_0 : i32, i32
  }
  func.func @transform_4(%arg0: i32) -> (i32, i32) {
    %c0_i32 = arith.constant 0 : i32
    %c0_i32_0 = arith.constant 0 : i32
    %c0_i32_1 = arith.constant 0 : i32
    return %c0_i32, %c0_i32_0 : i32, i32
  }
  func.func @transform_5(%arg0: i32) -> (i32, i32) {
    %c0_i32 = arith.constant 0 : i32
    %c0_i32_0 = arith.constant 0 : i32
    %c0_i32_1 = arith.constant 0 : i32
    return %c0_i32, %c0_i32_0 : i32, i32
  }
  func.func @transform_6(%arg0: i32) -> (i32, i32) {
    %c0_i32 = arith.constant 0 : i32
    %c0_i32_0 = arith.constant 0 : i32
    %c0_i32_1 = arith.constant 0 : i32
    return %c0_i32, %c0_i32_0 : i32, i32
  }
  func.func @transform_7(%arg0: i32) -> (i32, i32) {
    %c0_i32 = arith.constant 0 : i32
    %c0_i32_0 = arith.constant 0 : i32
    return %c0_i32, %arg0 : i32, i32
  }
}

</mosaic_0001>

<llo_original>
// kernel: qnet_forward.1
$region0: #{qnet_forward.1}
  #allocation0 [shape = 'u32[]', space=smem, size = 0x4, offset = 0x4, fixed_abs, tag = 'smem constant byte address 0x4 - core index']
  #allocation1 [shape = 'u32[72,128]{1,0:T(1,128)}', space=vmem, size = 0x9000, scoped, tag = 'internal scratch']
  %s0 = inlined_call_operand.vmem [shape: f32[4,256], index: 0, kind: input, shape index: {}]
  %s1 = inlined_call_operand.vmem [shape: f32[128,4], index: 1, kind: input, shape index: {}]
  %s2 = inlined_call_operand.vmem [shape: f32[128,1], index: 2, kind: input, shape index: {}]
  %s3 = inlined_call_operand.vmem [shape: bf16[128,128], index: 3, kind: input, shape index: {}]
  %s4 = inlined_call_operand.vmem [shape: f32[128,1], index: 4, kind: input, shape index: {}]
  %s5 = inlined_call_operand.vmem [shape: f32[8,128], index: 5, kind: input, shape index: {}]
  %s6 = inlined_call_operand.vmem [shape: f32[8,1], index: 6, kind: input, shape index: {}]
  %s7 = inlined_call_operand.vmem [shape: f32[8,256], index: 7, kind: output, shape index: {}]
  %s8 = sld [smem:[#allocation0]]
  $region38: #{qnet_forward.1} parent=0
    _
  %s10 = ssub.s32 1, %s8
  %s11 = scalar_select 0, %s10, %s8
  // Predicated region
  $region2: #{qnet_forward.1} parent=0 // pred_check
    _
  $region3: #{qnet_forward.1} parent=0 // pred_check_branch
    %13 = sbr.rel (0) target = $region5
  $region4: #{qnet_forward.1} parent=0 // pred_region
    _
  $region5: #{qnet_forward.1} parent=0 // pred_fallthru
    _
  // Predicated region
  $region6: #{qnet_forward.1} parent=0 // pred_check
    _
  $region7: #{qnet_forward.1} parent=0 // pred_check_branch
    %15 = sbr.rel (0) target = $region9
  $region8: #{qnet_forward.1} parent=0 // pred_region
    _
  $region9: #{qnet_forward.1} parent=0 // pred_fallthru
    _
  // Predicated region
  $region10: #{qnet_forward.1} parent=0 // pred_check
    _
  $region11: #{qnet_forward.1} parent=0 // pred_check_branch
    %17 = sbr.rel (0) target = $region13
  $region12: #{qnet_forward.1} parent=0 // pred_region
    _
  $region13: #{qnet_forward.1} parent=0 // pred_fallthru
    _
  // Predicated region
  $region14: #{qnet_forward.1} parent=0 // pred_check
    _
  $region15: #{qnet_forward.1} parent=0 // pred_check_branch
    %19 = sbr.rel (0) target = $region17
  $region16: #{qnet_forward.1} parent=0 // pred_region
    _
  $region17: #{qnet_forward.1} parent=0 // pred_fallthru
    _
  // Predicated region
  $region18: #{qnet_forward.1} parent=0 // pred_check
    _
  $region19: #{qnet_forward.1} parent=0 // pred_check_branch
    %21 = sbr.rel (0) target = $region21
  $region20: #{qnet_forward.1} parent=0 // pred_region
    _
  $region21: #{qnet_forward.1} parent=0 // pred_fallthru
    _
  // Predicated region
  $region22: #{qnet_forward.1} parent=0 // pred_check
    _
  $region23: #{qnet_forward.1} parent=0 // pred_check_branch
    %23 = sbr.rel (0) target = $region25
  $region24: #{qnet_forward.1} parent=0 // pred_region
    _
  $region25: #{qnet_forward.1} parent=0 // pred_fallthru
    _
  // Predicated region
  $region26: #{qnet_forward.1} parent=0 // pred_check
    _
  $region27: #{qnet_forward.1} parent=0 // pred_check_branch
    %25 = sbr.rel (0) target = $region29
  $region28: #{qnet_forward.1} parent=0 // pred_region
    _
  $region29: #{qnet_forward.1} parent=0 // pred_fallthru
    _
  %v26 = vld [vmem:[%s0] sm:$0xff]
  %v27 = vld [vmem:[%s1] sm:$0xff]
  %v28 = vld [vmem:[%s1 + $0x8] sm:$0xff]
  %v29 = vld [vmem:[%s1 + $0x10] sm:$0xff]
  %v30 = vld [vmem:[%s1 + $0x18] sm:$0xff]
  %v31 = vld [vmem:[%s1 + $0x20] sm:$0xff]
  %v32 = vld [vmem:[%s1 + $0x28] sm:$0xff]
  %v33 = vld [vmem:[%s1 + $0x30] sm:$0xff]
  %v34 = vld [vmem:[%s1 + $0x38] sm:$0xff]
  %v35 = vld [vmem:[%s1 + $0x40] sm:$0xff]
  %v36 = vld [vmem:[%s1 + $0x48] sm:$0xff]
  %v37 = vld [vmem:[%s1 + $0x50] sm:$0xff]
  %v38 = vld [vmem:[%s1 + $0x58] sm:$0xff]
  %v39 = vld [vmem:[%s1 + $0x60] sm:$0xff]
  %v40 = vld [vmem:[%s1 + $0x68] sm:$0xff]
  %v41 = vld [vmem:[%s1 + $0x70] sm:$0xff]
  %v42 = vld [vmem:[%s1 + $0x78] sm:$0xff]
  %v43 = vld [vmem:[%s2] sm:$0xff]
  %v44 = vld [vmem:[%s2 + $0x8] sm:$0xff]
  %v45 = vld [vmem:[%s2 + $0x10] sm:$0xff]
  %v46 = vld [vmem:[%s2 + $0x18] sm:$0xff]
  %v47 = vld [vmem:[%s2 + $0x20] sm:$0xff]
  %v48 = vld [vmem:[%s2 + $0x28] sm:$0xff]
  %v49 = vld [vmem:[%s2 + $0x30] sm:$0xff]
  %v50 = vld [vmem:[%s2 + $0x38] sm:$0xff]
  %v51 = vld [vmem:[%s2 + $0x40] sm:$0xff]
  %v52 = vld [vmem:[%s2 + $0x48] sm:$0xff]
  %v53 = vld [vmem:[%s2 + $0x50] sm:$0xff]
  %v54 = vld [vmem:[%s2 + $0x58] sm:$0xff]
  %v55 = vld [vmem:[%s2 + $0x60] sm:$0xff]
  %v56 = vld [vmem:[%s2 + $0x68] sm:$0xff]
  %v57 = vld [vmem:[%s2 + $0x70] sm:$0xff]
  %v58 = vld [vmem:[%s2 + $0x78] sm:$0xff]
  %60 = vset.pattern.permute.xlu0 0
  %61 = vperm.xlu0 %60, %v43
  %v62 = vpop.permute.xlu0 %61
  %65 = vset.pattern.permute.xlu0 0
  %66 = vperm.xlu0 %65, %v44
  %v67 = vpop.permute.xlu0 %66
  %70 = vset.pattern.permute.xlu0 0
  %71 = vperm.xlu0 %70, %v45
  %v72 = vpop.permute.xlu0 %71
  %75 = vset.pattern.permute.xlu0 0
  %76 = vperm.xlu0 %75, %v46
  %v77 = vpop.permute.xlu0 %76
  %80 = vset.pattern.permute.xlu0 0
  %81 = vperm.xlu0 %80, %v47
  %v82 = vpop.permute.xlu0 %81
  %85 = vset.pattern.permute.xlu0 0
  %86 = vperm.xlu0 %85, %v48
  %v87 = vpop.permute.xlu0 %86
  %90 = vset.pattern.permute.xlu0 0
  %91 = vperm.xlu0 %90, %v49
  %v92 = vpop.permute.xlu0 %91
  %95 = vset.pattern.permute.xlu0 0
  %96 = vperm.xlu0 %95, %v50
  %v97 = vpop.permute.xlu0 %96
  %100 = vset.pattern.permute.xlu0 0
  %101 = vperm.xlu0 %100, %v51
  %v102 = vpop.permute.xlu0 %101
  %105 = vset.pattern.permute.xlu0 0
  %106 = vperm.xlu0 %105, %v52
  %v107 = vpop.permute.xlu0 %106
  %110 = vset.pattern.permute.xlu0 0
  %111 = vperm.xlu0 %110, %v53
  %v112 = vpop.permute.xlu0 %111
  %115 = vset.pattern.permute.xlu0 0
  %116 = vperm.xlu0 %115, %v54
  %v117 = vpop.permute.xlu0 %116
  %120 = vset.pattern.permute.xlu0 0
  %121 = vperm.xlu0 %120, %v55
  %v122 = vpop.permute.xlu0 %121
  %125 = vset.pattern.permute.xlu0 0
  %126 = vperm.xlu0 %125, %v56
  %v127 = vpop.permute.xlu0 %126
  %130 = vset.pattern.permute.xlu0 0
  %131 = vperm.xlu0 %130, %v57
  %v132 = vpop.permute.xlu0 %131
  %135 = vset.pattern.permute.xlu0 0
  %136 = vperm.xlu0 %135, %v58
  %v137 = vpop.permute.xlu0 %136
  %140 = vset.pattern.permute.xlu0 0
  %141 = vperm.xlu0 %140, %v27
  %v142 = vpop.permute.xlu0 %141
  %145 = vset.pattern.permute.xlu0 0
  %146 = vperm.xlu0 %145, %v28
  %v147 = vpop.permute.xlu0 %146
  %150 = vset.pattern.permute.xlu0 0
  %151 = vperm.xlu0 %150, %v29
  %v152 = vpop.permute.xlu0 %151
  %155 = vset.pattern.permute.xlu0 0
  %156 = vperm.xlu0 %155, %v30
  %v157 = vpop.permute.xlu0 %156
  %160 = vset.pattern.permute.xlu0 0
  %161 = vperm.xlu0 %160, %v31
  %v162 = vpop.permute.xlu0 %161
  %165 = vset.pattern.permute.xlu0 0
  %166 = vperm.xlu0 %165, %v32
  %v167 = vpop.permute.xlu0 %166
  %170 = vset.pattern.permute.xlu0 0
  %171 = vperm.xlu0 %170, %v33
  %v172 = vpop.permute.xlu0 %171
  %175 = vset.pattern.permute.xlu0 0
  %176 = vperm.xlu0 %175, %v34
  %v177 = vpop.permute.xlu0 %176
  %180 = vset.pattern.permute.xlu0 0
  %181 = vperm.xlu0 %180, %v35
  %v182 = vpop.permute.xlu0 %181
  %185 = vset.pattern.permute.xlu0 0
  %186 = vperm.xlu0 %185, %v36
  %v187 = vpop.permute.xlu0 %186
  %190 = vset.pattern.permute.xlu0 0
  %191 = vperm.xlu0 %190, %v37
  %v192 = vpop.permute.xlu0 %191
  %195 = vset.pattern.permute.xlu0 0
  %196 = vperm.xlu0 %195, %v38
  %v197 = vpop.permute.xlu0 %196
  %200 = vset.pattern.permute.xlu0 0
  %201 = vperm.xlu0 %200, %v39
  %v202 = vpop.permute.xlu0 %201
  %205 = vset.pattern.permute.xlu0 0
  %206 = vperm.xlu0 %205, %v40
  %v207 = vpop.permute.xlu0 %206
  %210 = vset.pattern.permute.xlu0 0
  %211 = vperm.xlu0 %210, %v41
  %v212 = vpop.permute.xlu0 %211
  %215 = vset.pattern.permute.xlu0 0
  %216 = vperm.xlu0 %215, %v42
  %v217 = vpop.permute.xlu0 %216
  %v220 = vperm.slane %v26, 0
  %v221 = vperm.slane %v26, 4
  %v224 = vperm.slane %v220, 0
  %v225 = vperm.slane %v221, 0
  %v226 = vmul.f32 %v142, %v224
  %v227 = vmul.f32 %v142, %v225
  %v228 = vmul.f32 %v147, %v224
  %v229 = vmul.f32 %v147, %v225
  %v230 = vmul.f32 %v152, %v224
  %v231 = vmul.f32 %v152, %v225
  %v232 = vmul.f32 %v157, %v224
  %v233 = vmul.f32 %v157, %v225
  %v234 = vmul.f32 %v162, %v224
  %v235 = vmul.f32 %v162, %v225
  %v236 = vmul.f32 %v167, %v224
  %v237 = vmul.f32 %v167, %v225
  %v238 = vmul.f32 %v172, %v224
  %v239 = vmul.f32 %v172, %v225
  %v240 = vmul.f32 %v177, %v224
  %v241 = vmul.f32 %v177, %v225
  %v242 = vmul.f32 %v182, %v224
  %v243 = vmul.f32 %v182, %v225
  %v244 = vmul.f32 %v187, %v224
  %v245 = vmul.f32 %v187, %v225
  %v246 = vmul.f32 %v192, %v224
  %v247 = vmul.f32 %v192, %v225
  %v248 = vmul.f32 %v197, %v224
  %v249 = vmul.f32 %v197, %v225
  %v250 = vmul.f32 %v202, %v224
  %v251 = vmul.f32 %v202, %v225
  %v252 = vmul.f32 %v207, %v224
  %v253 = vmul.f32 %v207, %v225
  %v254 = vmul.f32 %v212, %v224
  %v255 = vmul.f32 %v212, %v225
  %v256 = vmul.f32 %v217, %v224
  %v257 = vmul.f32 %v217, %v225
  %v258 = vadd.f32 %v62, %v226
  %v259 = vadd.f32 %v62, %v227
  %v260 = vadd.f32 %v67, %v228
  %v261 = vadd.f32 %v67, %v229
  %v262 = vadd.f32 %v72, %v230
  %v263 = vadd.f32 %v72, %v231
  %v264 = vadd.f32 %v77, %v232
  %v265 = vadd.f32 %v77, %v233
  %v266 = vadd.f32 %v82, %v234
  %v267 = vadd.f32 %v82, %v235
  %v268 = vadd.f32 %v87, %v236
  %v269 = vadd.f32 %v87, %v237
  %v270 = vadd.f32 %v92, %v238
  %v271 = vadd.f32 %v92, %v239
  %v272 = vadd.f32 %v97, %v240
  %v273 = vadd.f32 %v97, %v241
  %v274 = vadd.f32 %v102, %v242
  %v275 = vadd.f32 %v102, %v243
  %v276 = vadd.f32 %v107, %v244
  %v277 = vadd.f32 %v107, %v245
  %v278 = vadd.f32 %v112, %v246
  %v279 = vadd.f32 %v112, %v247
  %v280 = vadd.f32 %v117, %v248
  %v281 = vadd.f32 %v117, %v249
  %v282 = vadd.f32 %v122, %v250
  %v283 = vadd.f32 %v122, %v251
  %v284 = vadd.f32 %v127, %v252
  %v285 = vadd.f32 %v127, %v253
  %v286 = vadd.f32 %v132, %v254
  %v287 = vadd.f32 %v132, %v255
  %v288 = vadd.f32 %v137, %v256
  %v289 = vadd.f32 %v137, %v257
  %290 = vset.pattern.permute.xlu0 1
  %291 = vperm.xlu0 %290, %v27
  %v292 = vpop.permute.xlu0 %291
  %294 = vset.pattern.permute.xlu0 1
  %295 = vperm.xlu0 %294, %v28
  %v296 = vpop.permute.xlu0 %295
  %298 = vset.pattern.permute.xlu0 1
  %299 = vperm.xlu0 %298, %v29
  %v300 = vpop.permute.xlu0 %299
  %302 = vset.pattern.permute.xlu0 1
  %303 = vperm.xlu0 %302, %v30
  %v304 = vpop.permute.xlu0 %303
  %306 = vset.pattern.permute.xlu0 1
  %307 = vperm.xlu0 %306, %v31
  %v308 = vpop.permute.xlu0 %307
  %310 = vset.pattern.permute.xlu0 1
  %311 = vperm.xlu0 %310, %v32
  %v312 = vpop.permute.xlu0 %311
  %314 = vset.pattern.permute.xlu0 1
  %315 = vperm.xlu0 %314, %v33
  %v316 = vpop.permute.xlu0 %315
  %318 = vset.pattern.permute.xlu0 1
  %319 = vperm.xlu0 %318, %v34
  %v320 = vpop.permute.xlu0 %319
  %322 = vset.pattern.permute.xlu0 1
  %323 = vperm.xlu0 %322, %v35
  %v324 = vpop.permute.xlu0 %323
  %326 = vset.pattern.permute.xlu0 1
  %327 = vperm.xlu0 %326, %v36
  %v328 = vpop.permute.xlu0 %327
  %330 = vset.pattern.permute.xlu0 1
  %331 = vperm.xlu0 %330, %v37
  %v332 = vpop.permute.xlu0 %331
  %334 = vset.pattern.permute.xlu0 1
  %335 = vperm.xlu0 %334, %v38
  %v336 = vpop.permute.xlu0 %335
  %338 = vset.pattern.permute.xlu0 1
  %339 = vperm.xlu0 %338, %v39
  %v340 = vpop.permute.xlu0 %339
  %342 = vset.pattern.permute.xlu0 1
  %343 = vperm.xlu0 %342, %v40
  %v344 = vpop.permute.xlu0 %343
  %346 = vset.pattern.permute.xlu0 1
  %347 = vperm.xlu0 %346, %v41
  %v348 = vpop.permute.xlu0 %347
  %350 = vset.pattern.permute.xlu0 1
  %351 = vperm.xlu0 %350, %v42
  %v352 = vpop.permute.xlu0 %351
  %v354 = vperm.slane %v26, 1
  %v355 = vperm.slane %v26, 5
  %v358 = vperm.slane %v354, 1
  %v359 = vperm.slane %v355, 1
  %v360 = vmul.f32 %v292, %v358
  %v361 = vmul.f32 %v292, %v359
  %v362 = vmul.f32 %v296, %v358
  %v363 = vmul.f32 %v296, %v359
  %v364 = vmul.f32 %v300, %v358
  %v365 = vmul.f32 %v300, %v359
  %v366 = vmul.f32 %v304, %v358
  %v367 = vmul.f32 %v304, %v359
  %v368 = vmul.f32 %v308, %v358
  %v369 = vmul.f32 %v308, %v359
  %v370 = vmul.f32 %v312, %v358
  %v371 = vmul.f32 %v312, %v359
  %v372 = vmul.f32 %v316, %v358
  %v373 = vmul.f32 %v316, %v359
  %v374 = vmul.f32 %v320, %v358
  %v375 = vmul.f32 %v320, %v359
  %v376 = vmul.f32 %v324, %v358
  %v377 = vmul.f32 %v324, %v359
  %v378 = vmul.f32 %v328, %v358
  %v379 = vmul.f32 %v328, %v359
  %v380 = vmul.f32 %v332, %v358
  %v381 = vmul.f32 %v332, %v359
  %v382 = vmul.f32 %v336, %v358
  %v383 = vmul.f32 %v336, %v359
  %v384 = vmul.f32 %v340, %v358
  %v385 = vmul.f32 %v340, %v359
  %v386 = vmul.f32 %v344, %v358
  %v387 = vmul.f32 %v344, %v359
  %v388 = vmul.f32 %v348, %v358
  %v389 = vmul.f32 %v348, %v359
  %v390 = vmul.f32 %v352, %v358
  %v391 = vmul.f32 %v352, %v359
  %v392 = vadd.f32 %v258, %v360
  %v393 = vadd.f32 %v259, %v361
  %v394 = vadd.f32 %v260, %v362
  %v395 = vadd.f32 %v261, %v363
  %v396 = vadd.f32 %v262, %v364
  %v397 = vadd.f32 %v263, %v365
  %v398 = vadd.f32 %v264, %v366
  %v399 = vadd.f32 %v265, %v367
  %v400 = vadd.f32 %v266, %v368
  %v401 = vadd.f32 %v267, %v369
  %v402 = vadd.f32 %v268, %v370
  %v403 = vadd.f32 %v269, %v371
  %v404 = vadd.f32 %v270, %v372
  %v405 = vadd.f32 %v271, %v373
  %v406 = vadd.f32 %v272, %v374
  %v407 = vadd.f32 %v273, %v375
  %v408 = vadd.f32 %v274, %v376
  %v409 = vadd.f32 %v275, %v377
  %v410 = vadd.f32 %v276, %v378
  %v411 = vadd.f32 %v277, %v379
  %v412 = vadd.f32 %v278, %v380
  %v413 = vadd.f32 %v279, %v381
  %v414 = vadd.f32 %v280, %v382
  %v415 = vadd.f32 %v281, %v383
  %v416 = vadd.f32 %v282, %v384
  %v417 = vadd.f32 %v283, %v385
  %v418 = vadd.f32 %v284, %v386
  %v419 = vadd.f32 %v285, %v387
  %v420 = vadd.f32 %v286, %v388
  %v421 = vadd.f32 %v287, %v389
  %v422 = vadd.f32 %v288, %v390
  %v423 = vadd.f32 %v289, %v391
  %424 = vset.pattern.permute.xlu0 2
  %425 = vperm.xlu0 %424, %v27
  %v426 = vpop.permute.xlu0 %425
  %428 = vset.pattern.permute.xlu0 2
  %429 = vperm.xlu0 %428, %v28
  %v430 = vpop.permute.xlu0 %429
  %432 = vset.pattern.permute.xlu0 2
  %433 = vperm.xlu0 %432, %v29
  %v434 = vpop.permute.xlu0 %433
  %436 = vset.pattern.permute.xlu0 2
  %437 = vperm.xlu0 %436, %v30
  %v438 = vpop.permute.xlu0 %437
  %440 = vset.pattern.permute.xlu0 2
  %441 = vperm.xlu0 %440, %v31
  %v442 = vpop.permute.xlu0 %441
  %444 = vset.pattern.permute.xlu0 2
  %445 = vperm.xlu0 %444, %v32
  %v446 = vpop.permute.xlu0 %445
  %448 = vset.pattern.permute.xlu0 2
  %449 = vperm.xlu0 %448, %v33
  %v450 = vpop.permute.xlu0 %449
  %452 = vset.pattern.permute.xlu0 2
  %453 = vperm.xlu0 %452, %v34
  %v454 = vpop.permute.xlu0 %453
  %456 = vset.pattern.permute.xlu0 2
  %457 = vperm.xlu0 %456, %v35
  %v458 = vpop.permute.xlu0 %457
  %460 = vset.pattern.permute.xlu0 2
  %461 = vperm.xlu0 %460, %v36
  %v462 = vpop.permute.xlu0 %461
  %464 = vset.pattern.permute.xlu0 2
  %465 = vperm.xlu0 %464, %v37
  %v466 = vpop.permute.xlu0 %465
  %468 = vset.pattern.permute.xlu0 2
  %469 = vperm.xlu0 %468, %v38
  %v470 = vpop.permute.xlu0 %469
  %472 = vset.pattern.permute.xlu0 2
  %473 = vperm.xlu0 %472, %v39
  %v474 = vpop.permute.xlu0 %473
  %476 = vset.pattern.permute.xlu0 2
  %477 = vperm.xlu0 %476, %v40
  %v478 = vpop.permute.xlu0 %477
  %480 = vset.pattern.permute.xlu0 2
  %481 = vperm.xlu0 %480, %v41
  %v482 = vpop.permute.xlu0 %481
  %484 = vset.pattern.permute.xlu0 2
  %485 = vperm.xlu0 %484, %v42
  %v486 = vpop.permute.xlu0 %485
  %v488 = vperm.slane %v26, 2
  %v489 = vperm.slane %v26, 6
  %v492 = vperm.slane %v488, 2
  %v493 = vperm.slane %v489, 2
  %v494 = vmul.f32 %v426, %v492
  %v495 = vmul.f32 %v426, %v493
  %v496 = vmul.f32 %v430, %v492
  %v497 = vmul.f32 %v430, %v493
  %v498 = vmul.f32 %v434, %v492
  %v499 = vmul.f32 %v434, %v493
  %v500 = vmul.f32 %v438, %v492
  %v501 = vmul.f32 %v438, %v493
  %v502 = vmul.f32 %v442, %v492
  %v503 = vmul.f32 %v442, %v493
  %v504 = vmul.f32 %v446, %v492
  %v505 = vmul.f32 %v446, %v493
  %v506 = vmul.f32 %v450, %v492
  %v507 = vmul.f32 %v450, %v493
  %v508 = vmul.f32 %v454, %v492
  %v509 = vmul.f32 %v454, %v493
  %v510 = vmul.f32 %v458, %v492
  %v511 = vmul.f32 %v458, %v493
  %v512 = vmul.f32 %v462, %v492
  %v513 = vmul.f32 %v462, %v493
  %v514 = vmul.f32 %v466, %v492
  %v515 = vmul.f32 %v466, %v493
  %v516 = vmul.f32 %v470, %v492
  %v517 = vmul.f32 %v470, %v493
  %v518 = vmul.f32 %v474, %v492
  %v519 = vmul.f32 %v474, %v493
  %v520 = vmul.f32 %v478, %v492
  %v521 = vmul.f32 %v478, %v493
  %v522 = vmul.f32 %v482, %v492
  %v523 = vmul.f32 %v482, %v493
  %v524 = vmul.f32 %v486, %v492
  %v525 = vmul.f32 %v486, %v493
  %v526 = vadd.f32 %v392, %v494
  %v527 = vadd.f32 %v393, %v495
  %v528 = vadd.f32 %v394, %v496
  %v529 = vadd.f32 %v395, %v497
  %v530 = vadd.f32 %v396, %v498
  %v531 = vadd.f32 %v397, %v499
  %v532 = vadd.f32 %v398, %v500
  %v533 = vadd.f32 %v399, %v501
  %v534 = vadd.f32 %v400, %v502
  %v535 = vadd.f32 %v401, %v503
  %v536 = vadd.f32 %v402, %v504
  %v537 = vadd.f32 %v403, %v505
  %v538 = vadd.f32 %v404, %v506
  %v539 = vadd.f32 %v405, %v507
  %v540 = vadd.f32 %v406, %v508
  %v541 = vadd.f32 %v407, %v509
  %v542 = vadd.f32 %v408, %v510
  %v543 = vadd.f32 %v409, %v511
  %v544 = vadd.f32 %v410, %v512
  %v545 = vadd.f32 %v411, %v513
  %v546 = vadd.f32 %v412, %v514
  %v547 = vadd.f32 %v413, %v515
  %v548 = vadd.f32 %v414, %v516
  %v549 = vadd.f32 %v415, %v517
  %v550 = vadd.f32 %v416, %v518
  %v551 = vadd.f32 %v417, %v519
  %v552 = vadd.f32 %v418, %v520
  %v553 = vadd.f32 %v419, %v521
  %v554 = vadd.f32 %v420, %v522
  %v555 = vadd.f32 %v421, %v523
  %v556 = vadd.f32 %v422, %v524
  %v557 = vadd.f32 %v423, %v525
  %558 = vset.pattern.permute.xlu0 3
  %559 = vperm.xlu0 %558, %v27
  %v560 = vpop.permute.xlu0 %559
  %562 = vset.pattern.permute.xlu0 3
  %563 = vperm.xlu0 %562, %v28
  %v564 = vpop.permute.xlu0 %563
  %566 = vset.pattern.permute.xlu0 3
  %567 = vperm.xlu0 %566, %v29
  %v568 = vpop.permute.xlu0 %567
  %570 = vset.pattern.permute.xlu0 3
  %571 = vperm.xlu0 %570, %v30
  %v572 = vpop.permute.xlu0 %571
  %574 = vset.pattern.permute.xlu0 3
  %575 = vperm.xlu0 %574, %v31
  %v576 = vpop.permute.xlu0 %575
  %578 = vset.pattern.permute.xlu0 3
  %579 = vperm.xlu0 %578, %v32
  %v580 = vpop.permute.xlu0 %579
  %582 = vset.pattern.permute.xlu0 3
  %583 = vperm.xlu0 %582, %v33
  %v584 = vpop.permute.xlu0 %583
  %586 = vset.pattern.permute.xlu0 3
  %587 = vperm.xlu0 %586, %v34
  %v588 = vpop.permute.xlu0 %587
  %590 = vset.pattern.permute.xlu0 3
  %591 = vperm.xlu0 %590, %v35
  %v592 = vpop.permute.xlu0 %591
  %594 = vset.pattern.permute.xlu0 3
  %595 = vperm.xlu0 %594, %v36
  %v596 = vpop.permute.xlu0 %595
  %598 = vset.pattern.permute.xlu0 3
  %599 = vperm.xlu0 %598, %v37
  %v600 = vpop.permute.xlu0 %599
  %602 = vset.pattern.permute.xlu0 3
  %603 = vperm.xlu0 %602, %v38
  %v604 = vpop.permute.xlu0 %603
  %606 = vset.pattern.permute.xlu0 3
  %607 = vperm.xlu0 %606, %v39
  %v608 = vpop.permute.xlu0 %607
  %610 = vset.pattern.permute.xlu0 3
  %611 = vperm.xlu0 %610, %v40
  %v612 = vpop.permute.xlu0 %611
  %614 = vset.pattern.permute.xlu0 3
  %615 = vperm.xlu0 %614, %v41
  %v616 = vpop.permute.xlu0 %615
  %618 = vset.pattern.permute.xlu0 3
  %619 = vperm.xlu0 %618, %v42
  %v620 = vpop.permute.xlu0 %619
  %v622 = vperm.slane %v26, 3
  %v623 = vperm.slane %v26, 7
  %v626 = vperm.slane %v622, 3
  %v627 = vperm.slane %v623, 3
  %v628 = vmul.f32 %v560, %v626
  %v629 = vmul.f32 %v560, %v627
  %v630 = vmul.f32 %v564, %v626
  %v631 = vmul.f32 %v564, %v627
  %v632 = vmul.f32 %v568, %v626
  %v633 = vmul.f32 %v568, %v627
  %v634 = vmul.f32 %v572, %v626
  %v635 = vmul.f32 %v572, %v627
  %v636 = vmul.f32 %v576, %v626
  %v637 = vmul.f32 %v576, %v627
  %v638 = vmul.f32 %v580, %v626
  %v639 = vmul.f32 %v580, %v627
  %v640 = vmul.f32 %v584, %v626
  %v641 = vmul.f32 %v584, %v627
  %v642 = vmul.f32 %v588, %v626
  %v643 = vmul.f32 %v588, %v627
  %v644 = vmul.f32 %v592, %v626
  %v645 = vmul.f32 %v592, %v627
  %v646 = vmul.f32 %v596, %v626
  %v647 = vmul.f32 %v596, %v627
  %v648 = vmul.f32 %v600, %v626
  %v649 = vmul.f32 %v600, %v627
  %v650 = vmul.f32 %v604, %v626
  %v651 = vmul.f32 %v604, %v627
  %v652 = vmul.f32 %v608, %v626
  %v653 = vmul.f32 %v608, %v627
  %v654 = vmul.f32 %v612, %v626
  %v655 = vmul.f32 %v612, %v627
  %v656 = vmul.f32 %v616, %v626
  %v657 = vmul.f32 %v616, %v627
  %v658 = vmul.f32 %v620, %v626
  %v659 = vmul.f32 %v620, %v627
  %v660 = vadd.f32 %v526, %v628
  %v661 = vadd.f32 %v527, %v629
  %v662 = vadd.f32 %v528, %v630
  %v663 = vadd.f32 %v529, %v631
  %v664 = vadd.f32 %v530, %v632
  %v665 = vadd.f32 %v531, %v633
  %v666 = vadd.f32 %v532, %v634
  %v667 = vadd.f32 %v533, %v635
  %v668 = vadd.f32 %v534, %v636
  %v669 = vadd.f32 %v535, %v637
  %v670 = vadd.f32 %v536, %v638
  %v671 = vadd.f32 %v537, %v639
  %v672 = vadd.f32 %v538, %v640
  %v673 = vadd.f32 %v539, %v641
  %v674 = vadd.f32 %v540, %v642
  %v675 = vadd.f32 %v541, %v643
  %v676 = vadd.f32 %v542, %v644
  %v677 = vadd.f32 %v543, %v645
  %v678 = vadd.f32 %v544, %v646
  %v679 = vadd.f32 %v545, %v647
  %v680 = vadd.f32 %v546, %v648
  %v681 = vadd.f32 %v547, %v649
  %v682 = vadd.f32 %v548, %v650
  %v683 = vadd.f32 %v549, %v651
  %v684 = vadd.f32 %v550, %v652
  %v685 = vadd.f32 %v551, %v653
  %v686 = vadd.f32 %v552, %v654
  %v687 = vadd.f32 %v553, %v655
  %v688 = vadd.f32 %v554, %v656
  %v689 = vadd.f32 %v555, %v657
  %v690 = vadd.f32 %v556, %v658
  %v691 = vadd.f32 %v557, %v659
  %v692 = vmax.f32 %v660, 0.0
  %v693 = vmax.f32 %v661, 0.0
  %v694 = vmax.f32 %v662, 0.0
  %v695 = vmax.f32 %v663, 0.0
  %v696 = vmax.f32 %v664, 0.0
  %v697 = vmax.f32 %v665, 0.0
  %v698 = vmax.f32 %v666, 0.0
  %v699 = vmax.f32 %v667, 0.0
  %v700 = vmax.f32 %v668, 0.0
  %v701 = vmax.f32 %v669, 0.0
  %v702 = vmax.f32 %v670, 0.0
  %v703 = vmax.f32 %v671, 0.0
  %v704 = vmax.f32 %v672, 0.0
  %v705 = vmax.f32 %v673, 0.0
  %v706 = vmax.f32 %v674, 0.0
  %v707 = vmax.f32 %v675, 0.0
  %v708 = vmax.f32 %v676, 0.0
  %v709 = vmax.f32 %v677, 0.0
  %v710 = vmax.f32 %v678, 0.0
  %v711 = vmax.f32 %v679, 0.0
  %v712 = vmax.f32 %v680, 0.0
  %v713 = vmax.f32 %v681, 0.0
  %v714 = vmax.f32 %v682, 0.0
  %v715 = vmax.f32 %v683, 0.0
  %v716 = vmax.f32 %v684, 0.0
  %v717 = vmax.f32 %v685, 0.0
  %v718 = vmax.f32 %v686, 0.0
  %v719 = vmax.f32 %v687, 0.0
  %v720 = vmax.f32 %v688, 0.0
  %v721 = vmax.f32 %v689, 0.0
  %v722 = vmax.f32 %v690, 0.0
  %v723 = vmax.f32 %v691, 0.0
  %v724 = vld [vmem:[%s3] sm:$0xf]
  %v725 = vld [vmem:[%s3 + $0x4] sm:$0xf]
  %v726 = vld [vmem:[%s3 + $0x8] sm:$0xf]
  %v727 = vld [vmem:[%s3 + $0xc] sm:$0xf]
  %v728 = vld [vmem:[%s3 + $0x10] sm:$0xf]
  %v729 = vld [vmem:[%s3 + $0x14] sm:$0xf]
  %v730 = vld [vmem:[%s3 + $0x18] sm:$0xf]
  %v731 = vld [vmem:[%s3 + $0x1c] sm:$0xf]
  %v732 = vld [vmem:[%s3 + $0x20] sm:$0xf]
  %v733 = vld [vmem:[%s3 + $0x24] sm:$0xf]
  %v734 = vld [vmem:[%s3 + $0x28] sm:$0xf]
  %v735 = vld [vmem:[%s3 + $0x2c] sm:$0xf]
  %v736 = vld [vmem:[%s3 + $0x30] sm:$0xf]
  %v737 = vld [vmem:[%s3 + $0x34] sm:$0xf]
  %v738 = vld [vmem:[%s3 + $0x38] sm:$0xf]
  %v739 = vld [vmem:[%s3 + $0x3c] sm:$0xf]
  %v740 = vpack.c.bf16 %v694, %v692
  %v741 = vpack.c.bf16 %v695, %v693
  %v742 = vpack.c.bf16 %v698, %v696
  %v743 = vpack.c.bf16 %v699, %v697
  %v744 = vpack.c.bf16 %v702, %v700
  %v745 = vpack.c.bf16 %v703, %v701
  %v746 = vpack.c.bf16 %v706, %v704
  %v747 = vpack.c.bf16 %v707, %v705
  %v748 = vpack.c.bf16 %v710, %v708
  %v749 = vpack.c.bf16 %v711, %v709
  %v750 = vpack.c.bf16 %v714, %v712
  %v751 = vpack.c.bf16 %v715, %v713
  %v752 = vpack.c.bf16 %v718, %v716
  %v753 = vpack.c.bf16 %v719, %v717
  %v754 = vpack.c.bf16 %v722, %v720
  %v755 = vpack.c.bf16 %v723, %v721
  %v756 = vld [vmem:[%s4] sm:$0xff]
  %v757 = vld [vmem:[%s4 + $0x8] sm:$0xff]
  %v758 = vld [vmem:[%s4 + $0x10] sm:$0xff]
  %v759 = vld [vmem:[%s4 + $0x18] sm:$0xff]
  %v760 = vld [vmem:[%s4 + $0x20] sm:$0xff]
  %v761 = vld [vmem:[%s4 + $0x28] sm:$0xff]
  %v762 = vld [vmem:[%s4 + $0x30] sm:$0xff]
  %v763 = vld [vmem:[%s4 + $0x38] sm:$0xff]
  %v764 = vld [vmem:[%s4 + $0x40] sm:$0xff]
  %v765 = vld [vmem:[%s4 + $0x48] sm:$0xff]
  %v766 = vld [vmem:[%s4 + $0x50] sm:$0xff]
  %v767 = vld [vmem:[%s4 + $0x58] sm:$0xff]
  %v768 = vld [vmem:[%s4 + $0x60] sm:$0xff]
  %v769 = vld [vmem:[%s4 + $0x68] sm:$0xff]
  %v770 = vld [vmem:[%s4 + $0x70] sm:$0xff]
  %v771 = vld [vmem:[%s4 + $0x78] sm:$0xff]
  %773 = vset.pattern.permute.xlu0 0
  %774 = vperm.xlu0 %773, %v756
  %v775 = vpop.permute.xlu0 %774
  %778 = vset.pattern.permute.xlu0 0
  %779 = vperm.xlu0 %778, %v757
  %v780 = vpop.permute.xlu0 %779
  %783 = vset.pattern.permute.xlu0 0
  %784 = vperm.xlu0 %783, %v758
  %v785 = vpop.permute.xlu0 %784
  %788 = vset.pattern.permute.xlu0 0
  %789 = vperm.xlu0 %788, %v759
  %v790 = vpop.permute.xlu0 %789
  %793 = vset.pattern.permute.xlu0 0
  %794 = vperm.xlu0 %793, %v760
  %v795 = vpop.permute.xlu0 %794
  %798 = vset.pattern.permute.xlu0 0
  %799 = vperm.xlu0 %798, %v761
  %v800 = vpop.permute.xlu0 %799
  %803 = vset.pattern.permute.xlu0 0
  %804 = vperm.xlu0 %803, %v762
  %v805 = vpop.permute.xlu0 %804
  %808 = vset.pattern.permute.xlu0 0
  %809 = vperm.xlu0 %808, %v763
  %v810 = vpop.permute.xlu0 %809
  %813 = vset.pattern.permute.xlu0 0
  %814 = vperm.xlu0 %813, %v764
  %v815 = vpop.permute.xlu0 %814
  %818 = vset.pattern.permute.xlu0 0
  %819 = vperm.xlu0 %818, %v765
  %v820 = vpop.permute.xlu0 %819
  %823 = vset.pattern.permute.xlu0 0
  %824 = vperm.xlu0 %823, %v766
  %v825 = vpop.permute.xlu0 %824
  %828 = vset.pattern.permute.xlu0 0
  %829 = vperm.xlu0 %828, %v767
  %v830 = vpop.permute.xlu0 %829
  %833 = vset.pattern.permute.xlu0 0
  %834 = vperm.xlu0 %833, %v768
  %v835 = vpop.permute.xlu0 %834
  %838 = vset.pattern.permute.xlu0 0
  %839 = vperm.xlu0 %838, %v769
  %v840 = vpop.permute.xlu0 %839
  %843 = vset.pattern.permute.xlu0 0
  %844 = vperm.xlu0 %843, %v770
  %v845 = vpop.permute.xlu0 %844
  %848 = vset.pattern.permute.xlu0 0
  %849 = vperm.xlu0 %848, %v771
  %v850 = vpop.permute.xlu0 %849
  %v868 = vunpack.c.l.b16 %v724
  %v869 = vunpack.c.l.b16 %v725
  %v870 = vunpack.c.l.b16 %v726
  %v871 = vunpack.c.l.b16 %v727
  %v872 = vunpack.c.l.b16 %v728
  %v873 = vunpack.c.l.b16 %v729
  %v874 = vunpack.c.l.b16 %v730
  %v875 = vunpack.c.l.b16 %v731
  %v876 = vunpack.c.l.b16 %v732
  %v877 = vunpack.c.l.b16 %v733
  %v878 = vunpack.c.l.b16 %v734
  %v879 = vunpack.c.l.b16 %v735
  %v880 = vunpack.c.l.b16 %v736
  %v881 = vunpack.c.l.b16 %v737
  %v882 = vunpack.c.l.b16 %v738
  %v883 = vunpack.c.l.b16 %v739
  %v884 = vpack.c.b16 %v869, %v868
  %v885 = vpack.c.b16 %v871, %v870
  %v886 = vpack.c.b16 %v873, %v872
  %v887 = vpack.c.b16 %v875, %v874
  %v888 = vpack.c.b16 %v877, %v876
  %v889 = vpack.c.b16 %v879, %v878
  %v890 = vpack.c.b16 %v881, %v880
  %v891 = vpack.c.b16 %v883, %v882
  %900 = vmatpush.bf16.msra.mxu0 %v754
  %901 = vmatpush.bf16.msra.mxu0 %v752
  %902 = vmatpush.bf16.msra.mxu0 %v750
  %903 = vmatpush.bf16.msra.mxu0 %v748
  %904 = vmatpush.bf16.msra.mxu0 %v746
  %905 = vmatpush.bf16.msra.mxu0 %v744
  %906 = vmatpush.bf16.msra.mxu0 %v742
  %907 = vmatpush.bf16.msra.mxu0 %v740
  %908 = vmatmul.bf16.gmra.mxu0 %v884
  %v909 = vpop.f32.mrf.mxu0
  %v910 = vadd.f32 %v775, %v909
  %v911 = vpop.f32.mrf.mxu0
  %v912 = vadd.f32 %v780, %v911
  %913 = vmatmul.bf16.gmra.mxu0 %v885
  %v914 = vpop.f32.mrf.mxu0
  %v915 = vadd.f32 %v785, %v914
  %v916 = vpop.f32.mrf.mxu0
  %v917 = vadd.f32 %v790, %v916
  %918 = vmatmul.bf16.gmra.mxu0 %v886
  %v919 = vpop.f32.mrf.mxu0
  %v920 = vadd.f32 %v795, %v919
  %v921 = vpop.f32.mrf.mxu0
  %v922 = vadd.f32 %v800, %v921
  %923 = vmatmul.bf16.gmra.mxu0 %v887
  %v924 = vpop.f32.mrf.mxu0
  %v925 = vadd.f32 %v805, %v924
  %v926 = vpop.f32.mrf.mxu0
  %v927 = vadd.f32 %v810, %v926
  %928 = vmatmul.bf16.gmra.mxu0 %v888
  %v929 = vpop.f32.mrf.mxu0
  %v930 = vadd.f32 %v815, %v929
  %v931 = vpop.f32.mrf.mxu0
  %v932 = vadd.f32 %v820, %v931
  %933 = vmatmul.bf16.gmra.mxu0 %v889
  %v934 = vpop.f32.mrf.mxu0
  %v935 = vadd.f32 %v825, %v934
  %v936 = vpop.f32.mrf.mxu0
  %v937 = vadd.f32 %v830, %v936
  %938 = vmatmul.bf16.gmra.mxu0 %v890
  %v939 = vpop.f32.mrf.mxu0
  %v940 = vadd.f32 %v835, %v939
  %v941 = vpop.f32.mrf.mxu0
  %v942 = vadd.f32 %v840, %v941
  %943 = vmatmul.bf16.gmra.mxu0 %v891
  %v944 = vpop.f32.mrf.mxu0
  %v945 = vadd.f32 %v845, %v944
  %v946 = vpop.f32.mrf.mxu0
  %v947 = vadd.f32 %v850, %v946
  %948 = vdwg.mxu0
  %949 = vmatpush.bf16.msra.mxu0 %v755
  %950 = vmatpush.bf16.msra.mxu0 %v753
  %951 = vmatpush.bf16.msra.mxu0 %v751
  %952 = vmatpush.bf16.msra.mxu0 %v749
  %953 = vmatpush.bf16.msra.mxu0 %v747
  %954 = vmatpush.bf16.msra.mxu0 %v745
  %955 = vmatpush.bf16.msra.mxu0 %v743
  %956 = vmatpush.bf16.msra.mxu0 %v741
  %957 = vmatmul.bf16.gmra.mxu0 %v884
  %v958 = vpop.f32.mrf.mxu0
  %v959 = vadd.f32 %v775, %v958
  %v960 = vpop.f32.mrf.mxu0
  %v961 = vadd.f32 %v780, %v960
  %962 = vmatmul.bf16.gmra.mxu0 %v885
  %v963 = vpop.f32.mrf.mxu0
  %v964 = vadd.f32 %v785, %v963
  %v965 = vpop.f32.mrf.mxu0
  %v966 = vadd.f32 %v790, %v965
  %967 = vmatmul.bf16.gmra.mxu0 %v886
  %v968 = vpop.f32.mrf.mxu0
  %v969 = vadd.f32 %v795, %v968
  %v970 = vpop.f32.mrf.mxu0
  %v971 = vadd.f32 %v800, %v970
  %972 = vmatmul.bf16.gmra.mxu0 %v887
  %v973 = vpop.f32.mrf.mxu0
  %v974 = vadd.f32 %v805, %v973
  %v975 = vpop.f32.mrf.mxu0
  %v976 = vadd.f32 %v810, %v975
  %977 = vmatmul.bf16.gmra.mxu0 %v888
  %v978 = vpop.f32.mrf.mxu0
  %v979 = vadd.f32 %v815, %v978
  %v980 = vpop.f32.mrf.mxu0
  %v981 = vadd.f32 %v820, %v980
  %982 = vmatmul.bf16.gmra.mxu0 %v889
  %v983 = vpop.f32.mrf.mxu0
  %v984 = vadd.f32 %v825, %v983
  %v985 = vpop.f32.mrf.mxu0
  %v986 = vadd.f32 %v830, %v985
  %987 = vmatmul.bf16.gmra.mxu0 %v890
  %v988 = vpop.f32.mrf.mxu0
  %v989 = vadd.f32 %v835, %v988
  %v990 = vpop.f32.mrf.mxu0
  %v991 = vadd.f32 %v840, %v990
  %992 = vmatmul.bf16.gmra.mxu0 %v891
  %v993 = vpop.f32.mrf.mxu0
  %v994 = vadd.f32 %v845, %v993
  %v995 = vpop.f32.mrf.mxu0
  %v996 = vadd.f32 %v850, %v995
  %997 = vdwg.mxu0
  %v998 = vmax.f32 %v910, 0.0
  %v999 = vmax.f32 %v959, 0.0
  %v1000 = vmax.f32 %v912, 0.0
  %v1001 = vmax.f32 %v961, 0.0
  %v1002 = vmax.f32 %v915, 0.0
  %v1003 = vmax.f32 %v964, 0.0
  %v1004 = vmax.f32 %v917, 0.0
  %v1005 = vmax.f32 %v966, 0.0
  %v1006 = vmax.f32 %v920, 0.0
  %v1007 = vmax.f32 %v969, 0.0
  %v1008 = vmax.f32 %v922, 0.0
  %v1009 = vmax.f32 %v971, 0.0
  %v1010 = vmax.f32 %v925, 0.0
  %v1011 = vmax.f32 %v974, 0.0
  %v1012 = vmax.f32 %v927, 0.0
  %v1013 = vmax.f32 %v976, 0.0
  %v1014 = vmax.f32 %v930, 0.0
  %v1015 = vmax.f32 %v979, 0.0
  %v1016 = vmax.f32 %v932, 0.0
  %v1017 = vmax.f32 %v981, 0.0
  %v1018 = vmax.f32 %v935, 0.0
  %v1019 = vmax.f32 %v984, 0.0
  %v1020 = vmax.f32 %v937, 0.0
  %v1021 = vmax.f32 %v986, 0.0
  %v1022 = vmax.f32 %v940, 0.0
  %v1023 = vmax.f32 %v989, 0.0
  %v1024 = vmax.f32 %v942, 0.0
  %v1025 = vmax.f32 %v991, 0.0
  %v1026 = vmax.f32 %v945, 0.0
  %v1027 = vmax.f32 %v994, 0.0
  %v1028 = vmax.f32 %v947, 0.0
  %v1029 = vmax.f32 %v996, 0.0
  %v1030 = vld [vmem:[%s5] sm:$0xff]
  %v1031 = vld [vmem:[%s6] sm:$0xff]
  %1033 = vset.pattern.permute.xlu0 0
  %1034 = vperm.xlu0 %1033, %v1031
  %v1035 = vpop.permute.xlu0 %1034
  %1037 = vmatpush.msra.mxu0 %v1028
  %1038 = vmatpush.msra.mxu0 %v1026
  %1039 = vmatpush.msra.mxu0 %v1024
  %1040 = vmatpush.msra.mxu0 %v1022
  %1041 = vmatpush.msra.mxu0 %v1020
  %1042 = vmatpush.msra.mxu0 %v1018
  %1043 = vmatpush.msra.mxu0 %v1016
  %1044 = vmatpush.msra.mxu0 %v1014
  %1045 = vmatpush.msra.mxu0 %v1012
  %1046 = vmatpush.msra.mxu0 %v1010
  %1047 = vmatpush.msra.mxu0 %v1008
  %1048 = vmatpush.msra.mxu0 %v1006
  %1049 = vmatpush.msra.mxu0 %v1004
  %1050 = vmatpush.msra.mxu0 %v1002
  %1051 = vmatpush.msra.mxu0 %v1000
  %1052 = vmatpush.msra.mxu0 %v998
  %1053 = vmatmul.f32.gmra.mxu0 %v1030
  %v1054 = vpop.f32.mrf.mxu0
  %v1055 = vadd.f32 %v1035, %v1054
  %1056 = vdwg.mxu0
  %1057 = vmatpush.msra.mxu0 %v1029
  %1058 = vmatpush.msra.mxu0 %v1027
  %1059 = vmatpush.msra.mxu0 %v1025
  %1060 = vmatpush.msra.mxu0 %v1023
  %1061 = vmatpush.msra.mxu0 %v1021
  %1062 = vmatpush.msra.mxu0 %v1019
  %1063 = vmatpush.msra.mxu0 %v1017
  %1064 = vmatpush.msra.mxu0 %v1015
  %1065 = vmatpush.msra.mxu0 %v1013
  %1066 = vmatpush.msra.mxu0 %v1011
  %1067 = vmatpush.msra.mxu0 %v1009
  %1068 = vmatpush.msra.mxu0 %v1007
  %1069 = vmatpush.msra.mxu0 %v1005
  %1070 = vmatpush.msra.mxu0 %v1003
  %1071 = vmatpush.msra.mxu0 %v1001
  %1072 = vmatpush.msra.mxu0 %v999
  %1073 = vmatmul.f32.gmra.mxu0 %v1030
  %v1074 = vpop.f32.mrf.mxu0
  %v1075 = vadd.f32 %v1035, %v1074
  %1076 = vdwg.mxu0
  %1077 = vst [vmem:[%s7] sm:$0xff] %v1055
  %1078 = vst [vmem:[%s7 + $0x8] sm:$0xff] %v1075
  // Predicated region
  $region30: #{qnet_forward.1} parent=0 // pred_check
    _
  $region31: #{qnet_forward.1} parent=0 // pred_check_branch
    %1080 = sbr.rel (0) target = $region33
  $region32: #{qnet_forward.1} parent=0 // pred_region
    _
  $region33: #{qnet_forward.1} parent=0 // pred_fallthru
    _
  // Predicated region
  $region34: #{qnet_forward.1} parent=0 // pred_check
    _
  $region35: #{qnet_forward.1} parent=0 // pred_check_branch
    %1082 = sbr.rel (0) target = $region37
  $region36: #{qnet_forward.1} parent=0 // pred_region
    _
  $region37: #{qnet_forward.1} parent=0 // pred_fallthru
    _

</llo_original>
